<compile_context>
chip_gen: v6e
topology: v6e:2x2x1
jax: 0.10.0
libtpu: 0.0.40
codegen_flags: <defaults>
</compile_context>

<pallas_src>
import jax
import jax.numpy as jnp
from jax.experimental import pallas as pl
from jax.experimental.pallas import tpu as pltpu

HIDDEN = 256
LANES = 128
TB_TARGET = 2048                      # target batch-tile rows (multiple of 128)
VMEM_LIMIT = 32 * 1024 * 1024         # safe scoped-VMEM limit on all generations


def _cdiv(a, b):
    return (a + b - 1) // b


def _round_up(x, m):
    return _cdiv(x, m) * m


def _mlp_kernel(x_ref, w1_ref, b1_ref, w2_ref, b2_ref, w3t_ref, b3_ref, o_ref):
    # Layer 1: Linear(g_dim, 256) + ReLU  (bf16 MXU operands, f32 accumulation)
    h1 = jnp.dot(x_ref[...], w1_ref[...], preferred_element_type=jnp.float32)
    h1 = jnp.maximum(h1 + b1_ref[...], 0.0)
    # Layer 2: Linear(256, 256) + ReLU
    h2 = jnp.dot(h1.astype(jnp.bfloat16), w2_ref[...],
                 preferred_element_type=jnp.float32)
    h2 = jnp.maximum(h2 + b2_ref[...], 0.0)
    # Layer 3: Linear(256, 1) as a VPU multiply + lane reduce in f32 (an N=1
    # MXU matmul would run at 1/256 column utilization).  b3 is a scalar read
    # from SMEM.
    col = jnp.sum(h2 * w3t_ref[...], axis=-1, keepdims=True) + b3_ref[0, 0]

    # Lane-dense store: relayout the (tb, 1) column into the (tb//128, 128)
    # output slab so stores are full 128-lane vsts and the writeback DMA is
    # dense.  Per 128-row slab: broadcast the column against an eye mask and
    # reduce over sublanes (exact in f32: adding zeros).  XLU has slack here.
    n_slabs = o_ref.shape[0]
    eye = (jax.lax.broadcasted_iota(jnp.int32, (LANES, LANES), 0)
           == jax.lax.broadcasted_iota(jnp.int32, (LANES, LANES), 1)
           ).astype(jnp.float32)
    for g in range(n_slabs):                                # static, <= 16
        blk = col[g * LANES:(g + 1) * LANES, :] * eye       # (128,1)*(128,128)
        row = jnp.sum(blk, axis=0, keepdims=True)           # (1,128) lane-dense
        o_ref[pl.ds(g, 1), :] = row.astype(o_ref.dtype)


def _choose_tiling(B):
    """Even number of grid steps >= 2 (keeps both v7x TensorCores busy), batch
    tile a multiple of 128 (lane-dense output slab), minimal batch padding."""
    n_steps = 2 * _cdiv(B, 2 * TB_TARGET)        # 2, 4, 6, ...
    tb = _round_up(_cdiv(B, n_steps), LANES)
    return tb, n_steps


def goal_discriminator_forward(goal, params):
    """Fused 3-layer MLP forward pass on TPU via Pallas.

    goal: (B, g_dim) float32
    params: dict with w1 (g_dim,256), b1 (1,256), w2 (256,256), b2 (1,256),
            w3 (256,1), b3 (1,1)  (float32, weights stored as (in, out))
    returns: (B, 1) float32
    """
    B, g_dim = goal.shape
    tb, n_steps = _choose_tiling(B)
    b_pad = tb * n_steps
    if b_pad != B:
        goal = jnp.pad(goal, ((0, b_pad - B), (0, 0)))
    goal = goal.astype(jnp.bfloat16)

    w1 = params["w1"].astype(jnp.bfloat16)
    w2 = params["w2"].astype(jnp.bfloat16)
    b1 = params["b1"]
    b2 = params["b2"]
    w3t = params["w3"].reshape(1, HIDDEN)        # (256,1) -> lane-dense (1,256)
    b3 = params["b3"]                            # (1,1) f32 scalar -> SMEM

    n_slabs = tb // LANES
    const = lambda i: (0, 0)                     # resident weights/biases
    resident = dict(pipeline_mode=pl.Buffered(1))  # fetched once, single buffer

    flops = 2 * b_pad * (g_dim * HIDDEN + HIDDEN * HIDDEN + HIDDEN)
    bytes_accessed = (
        b_pad * g_dim * 2            # goal (bf16)
        + g_dim * HIDDEN * 2         # w1 (bf16)
        + HIDDEN * HIDDEN * 2        # w2 (bf16)
        + 3 * HIDDEN * 4 + 4         # b1, b2, w3t, b3 (f32)
        + b_pad * 4                  # output slab (f32)
    )

    out = pl.pallas_call(
        _mlp_kernel,
        out_shape=jax.ShapeDtypeStruct((n_steps, n_slabs, LANES), jnp.float32),
        grid_spec=pltpu.PrefetchScalarGridSpec(
            num_scalar_prefetch=0,
            grid=(n_steps,),
            in_specs=[
                pl.BlockSpec((tb, g_dim), lambda i: (i, 0)),         # goal tile
                pl.BlockSpec((g_dim, HIDDEN), const, **resident),    # w1
                pl.BlockSpec((1, HIDDEN), const, **resident),        # b1
                pl.BlockSpec((HIDDEN, HIDDEN), const, **resident),   # w2
                pl.BlockSpec((1, HIDDEN), const, **resident),        # b2
                pl.BlockSpec((1, HIDDEN), const, **resident),        # w3t
                pl.BlockSpec(memory_space=pltpu.MemorySpace.SMEM),   # b3 scalar
            ],
            out_specs=pl.BlockSpec((None, n_slabs, LANES),
                                   lambda i: (i, 0, 0)),
        ),
        compiler_params=pltpu.CompilerParams(
            dimension_semantics=("parallel",),
            vmem_limit_bytes=VMEM_LIMIT,
        ),
        cost_estimate=pl.CostEstimate(
            flops=flops, transcendentals=0, bytes_accessed=bytes_accessed),
    )(goal, w1, b1, w2, b2, w3t, b3)

    # (n_steps, tb//128, 128) slab -> flat batch order -> (B, 1)
    return out.reshape(-1)[:B].reshape(B, 1)


def init_params(key, g_dim):
    """Deterministic synthetic parameters matching the PyTorch module's shapes."""
    k1, k2, k3, k4, k5, k6 = jax.random.split(key, 6)

    def lin(kw, kb, fan_in, fan_out):
        bound = 1.0 / jnp.sqrt(fan_in)
        w = jax.random.uniform(kw, (fan_in, fan_out), jnp.float32, -bound, bound)
        b = jax.random.uniform(kb, (1, fan_out), jnp.float32, -bound, bound)
        return w, b

    w1, b1 = lin(k1, k2, g_dim, HIDDEN)
    w2, b2 = lin(k3, k4, HIDDEN, HIDDEN)
    w3, b3 = lin(k5, k6, HIDDEN, 1)
    return {"w1": w1, "b1": b1, "w2": w2, "b2": b2, "w3": w3, "b3": b3}


def _reference(goal, p):
    # Pure f32 reference (PyTorch-equivalent math).
    h1 = jnp.maximum(goal @ p["w1"] + p["b1"], 0.0)
    h2 = jnp.maximum(h1 @ p["w2"] + p["b2"], 0.0)
    return h2 @ p["w3"] + p["b3"]


if __name__ == "__main__":
    key = jax.random.PRNGKey(0)
    k_param, k_goal = jax.random.split(key)

    g_dim = 32
    batch = 2
    params = init_params(k_param, g_dim)
    goal = jax.random.normal(k_goal, (batch, g_dim), jnp.float32)

    out = goal_discriminator_forward(goal, params)
    out = jax.block_until_ready(out)

    ref = _reference(goal, params)
    assert out.shape == (batch, 1), out.shape
    # bf16 matmul operands with f32 accumulation -> looser tolerance vs the
    # pure-f32 reference.
    assert jnp.allclose(out, ref, atol=2e-2, rtol=2e-2), (out, ref)

    print("KERNEL_OK")
</pallas_src>

<mosaic_0001>
module attributes {stable_mosaic.version = 11 : i64} {
  func.func @_mlp_kernel(%arg0: i32, %arg1: memref<128x32xbf16, #tpu.memory_space<vmem>>, %arg2: memref<32x256xbf16, #tpu.memory_space<vmem>>, %arg3: memref<1x256xf32, #tpu.memory_space<vmem>>, %arg4: memref<256x256xbf16, #tpu.memory_space<vmem>>, %arg5: memref<1x256xf32, #tpu.memory_space<vmem>>, %arg6: memref<1x256xf32, #tpu.memory_space<vmem>>, %arg7: memref<1x1xf32, #tpu.memory_space<smem>>, %arg8: memref<1x1x128xf32, #tpu.memory_space<vmem>>) attributes {dimension_semantics = [#tpu.dimension_semantics<parallel>], iteration_bounds = array<i64: 2>, scalar_prefetch = 0 : i64, scratch_operands = 0 : i64, tpu.core_type = #tpu.core_type<tc>, window_params = [{transform_indices = @transform_0, window_bounds = array<i64: 128, 32>}, {pipeline_mode = #tpu.pipeline_mode<synchronous>, transform_indices = @transform_1, window_bounds = array<i64: 32, 256>}, {pipeline_mode = #tpu.pipeline_mode<synchronous>, transform_indices = @transform_2, window_bounds = array<i64: 1, 256>}, {pipeline_mode = #tpu.pipeline_mode<synchronous>, transform_indices = @transform_3, window_bounds = array<i64: 256, 256>}, {pipeline_mode = #tpu.pipeline_mode<synchronous>, transform_indices = @transform_4, window_bounds = array<i64: 1, 256>}, {pipeline_mode = #tpu.pipeline_mode<synchronous>, transform_indices = @transform_5, window_bounds = array<i64: 1, 256>}, {transform_indices = @transform_6, window_bounds = array<i64: 1, 1>}, {transform_indices = @transform_7, window_bounds = array<i64: 1, 1, 128>}]} {
    %c0 = arith.constant 0 : index
    %c0_0 = arith.constant 0 : index
    %0 = vector.load %arg1[%c0, %c0_0] : memref<128x32xbf16, #tpu.memory_space<vmem>>, vector<128x32xbf16>
    %c0_1 = arith.constant 0 : index
    %c0_2 = arith.constant 0 : index
    %1 = vector.load %arg2[%c0_1, %c0_2] : memref<32x256xbf16, #tpu.memory_space<vmem>>, vector<32x256xbf16>
    %cst = arith.constant dense<0.000000e+00> : vector<128x256xf32>
    %2 = tpu.matmul %0, %1, %cst {dimension_numbers = #tpu.dot_dimension_numbers<[1], [0], [0], [1], [0, 0, 1, 1], [], []>} : vector<128x32xbf16>, vector<32x256xbf16>, vector<128x256xf32> -> vector<128x256xf32>
    %c0_3 = arith.constant 0 : index
    %c0_4 = arith.constant 0 : index
    %3 = vector.load %arg3[%c0_3, %c0_4] : memref<1x256xf32, #tpu.memory_space<vmem>>, vector<1x256xf32>
    %4 = vector.broadcast %3 : vector<1x256xf32> to vector<128x256xf32>
    %5 = arith.addf %2, %4 : vector<128x256xf32>
    %cst_5 = arith.constant 0.000000e+00 : f32
    %6 = vector.broadcast %cst_5 : f32 to vector<128x256xf32>
    %7 = arith.maximumf %5, %6 : vector<128x256xf32>
    %8 = arith.truncf %7 : vector<128x256xf32> to vector<128x256xbf16>
    %c0_6 = arith.constant 0 : index
    %c0_7 = arith.constant 0 : index
    %9 = vector.load %arg4[%c0_6, %c0_7] : memref<256x256xbf16, #tpu.memory_space<vmem>>, vector<256x256xbf16>
    %cst_8 = arith.constant dense<0.000000e+00> : vector<128x256xf32>
    %10 = tpu.matmul %8, %9, %cst_8 {dimension_numbers = #tpu.dot_dimension_numbers<[1], [0], [0], [1], [0, 0, 1, 1], [], []>} : vector<128x256xbf16>, vector<256x256xbf16>, vector<128x256xf32> -> vector<128x256xf32>
    %c0_9 = arith.constant 0 : index
    %c0_10 = arith.constant 0 : index
    %11 = vector.load %arg5[%c0_9, %c0_10] : memref<1x256xf32, #tpu.memory_space<vmem>>, vector<1x256xf32>
    %12 = vector.broadcast %11 : vector<1x256xf32> to vector<128x256xf32>
    %13 = arith.addf %10, %12 : vector<128x256xf32>
    %cst_11 = arith.constant 0.000000e+00 : f32
    %14 = vector.broadcast %cst_11 : f32 to vector<128x256xf32>
    %15 = arith.maximumf %13, %14 : vector<128x256xf32>
    %c0_12 = arith.constant 0 : index
    %c0_13 = arith.constant 0 : index
    %16 = vector.load %arg6[%c0_12, %c0_13] : memref<1x256xf32, #tpu.memory_space<vmem>>, vector<1x256xf32>
    %17 = vector.broadcast %16 : vector<1x256xf32> to vector<128x256xf32>
    %18 = arith.mulf %15, %17 : vector<128x256xf32>
    %cst_14 = arith.constant dense<0.000000e+00> : vector<128xf32>
    %19 = vector.multi_reduction <add>, %18, %cst_14 [1] : vector<128x256xf32> to vector<128xf32>
    %20 = vector.shape_cast %19 : vector<128xf32> to vector<128x1xf32>
    %c0_15 = arith.constant 0 : index
    %c0_16 = arith.constant 0 : index
    %21 = memref.load %arg7[%c0_15, %c0_16] : memref<1x1xf32, #tpu.memory_space<smem>>
    %22 = vector.broadcast %21 : f32 to vector<128x1xf32>
    %23 = arith.addf %20, %22 : vector<128x1xf32>
    %24 = tpu.iota {dimensions = array<i32: 0>} : vector<128x128xi32>
    %25 = tpu.iota {dimensions = array<i32: 1>} : vector<128x128xi32>
    %26 = arith.cmpi eq, %24, %25 : vector<128x128xi32>
    %27 = arith.extui %26 : vector<128x128xi1> to vector<128x128xi32>
    %28 = arith.sitofp %27 : vector<128x128xi32> to vector<128x128xf32>
    %29 = vector.broadcast %23 : vector<128x1xf32> to vector<128x128xf32>
    %30 = arith.mulf %29, %28 : vector<128x128xf32>
    %cst_17 = arith.constant dense<0.000000e+00> : vector<128xf32>
    %31 = vector.multi_reduction <add>, %30, %cst_17 [0] : vector<128x128xf32> to vector<128xf32>
    %32 = vector.shape_cast %31 : vector<128xf32> to vector<1x128xf32>
    %c0_18 = arith.constant 0 : index
    %c0_19 = arith.constant 0 : index
    %c0_20 = arith.constant 0 : index
    %33 = vector.load %arg8[%c0_18, %c0_19, %c0_20] : memref<1x1x128xf32, #tpu.memory_space<vmem>>, vector<1x1x128xf32>
    %34 = vector.shape_cast %33 : vector<1x1x128xf32> to vector<1x128xf32>
    %35 = vector.shape_cast %32 : vector<1x128xf32> to vector<1x1x128xf32>
    tpu.vector_store %arg8[%c0_18, %c0_19, %c0_20], %35 {strides = array<i32>} : memref<1x1x128xf32, #tpu.memory_space<vmem>>, vector<1x1x128xf32>,
    return
  }
  func.func @transform_0(%arg0: i32) -> (i32, i32) {
    %c0_i32 = arith.constant 0 : i32
    %c0_i32_0 = arith.constant 0 : i32
    return %arg0, %c0_i32 : i32, i32
  }
  func.func @transform_1(%arg0: i32) -> (i32, i32) {
    %c0_i32 = arith.constant 0 : i32
    %c0_i32_0 = arith.constant 0 : i32
    %c0_i32_1 = arith.constant 0 : i32
    return %c0_i32, %c0_i32_0 : i32, i32
  }
  func.func @transform_2(%arg0: i32) -> (i32, i32) {
    %c0_i32 = arith.constant 0 : i32
    %c0_i32_0 = arith.constant 0 : i32
    %c0_i32_1 = arith.constant 0 : i32
    return %c0_i32, %c0_i32_0 : i32, i32
  }
  func.func @transform_3(%arg0: i32) -> (i32, i32) {
    %c0_i32 = arith.constant 0 : i32
    %c0_i32_0 = arith.constant 0 : i32
    %c0_i32_1 = arith.constant 0 : i32
    return %c0_i32, %c0_i32_0 : i32, i32
  }
  func.func @transform_4(%arg0: i32) -> (i32, i32) {
    %c0_i32 = arith.constant 0 : i32
    %c0_i32_0 = arith.constant 0 : i32
    %c0_i32_1 = arith.constant 0 : i32
    return %c0_i32, %c0_i32_0 : i32, i32
  }
  func.func @transform_5(%arg0: i32) -> (i32, i32) {
    %c0_i32 = arith.constant 0 : i32
    %c0_i32_0 = arith.constant 0 : i32
    %c0_i32_1 = arith.constant 0 : i32
    return %c0_i32, %c0_i32_0 : i32, i32
  }
  func.func @transform_6(%arg0: i32) -> (i32, i32) {
    %c0_i32 = arith.constant 0 : i32
    %c0_i32_0 = arith.constant 0 : i32
    %c0_i32_1 = arith.constant 0 : i32
    return %c0_i32, %c0_i32_0 : i32, i32
  }
  func.func @transform_7(%arg0: i32) -> (i32, i32, i32) {
    %c0_i32 = arith.constant 0 : i32
    %c0_i32_0 = arith.constant 0 : i32
    %c0_i32_1 = arith.constant 0 : i32
    return %arg0, %c0_i32, %c0_i32_0 : i32, i32, i32
  }
}

</mosaic_0001>

<llo_original>
// kernel: tpu_custom_call.1
$region0: #{tpu_custom_call.1}
  #allocation0 [shape = 'u32[]', space=smem, size = 0x4, offset = 0x4, fixed_abs, tag = 'smem constant byte address 0x4 - core index']
  #allocation1 [shape = 'u32[144,128]{1,0:T(1,128)}', space=vmem, size = 0x12000, scoped, tag = 'internal scratch']
  #allocation2 [shape = 'f32[1,1]{1,0:T(1,128)S(6)}', space=smem, size = 0x200, scoped, tag = 'scoped memory for tpu_custom_call.1']
  %s0 = inlined_call_operand.vmem [shape: bf16[256,32], index: 0, kind: input, shape index: {}]
  %s1 = inlined_call_operand.vmem [shape: bf16[32,256], index: 1, kind: input, shape index: {}]
  %s2 = inlined_call_operand.vmem [shape: f32[1,256], index: 2, kind: input, shape index: {}]
  %s3 = inlined_call_operand.hbm [shape: bf16[256,256], index: 3, kind: input, shape index: {}]
  %s4 = inlined_call_operand.vmem [shape: f32[1,256], index: 4, kind: input, shape index: {}]
  %s5 = inlined_call_operand.vmem [shape: f32[1,256], index: 5, kind: input, shape index: {}]
  %s6 = inlined_call_operand.<no memory space> [shape: f32[1,1], index: 6, kind: input, shape index: {}]
  %s7 = inlined_call_operand.hbm [shape: f32[2,1,128], index: 7, kind: output, shape index: {}]
  %s8 = sld [smem:[#allocation0]]
  $region65: #{tpu_custom_call.1} parent=0
    _
  %s10 = ssub.s32 1, %s8
  %s11 = scalar_select 0, %s10, %s8
  %12 = sst [smem:[#allocation2]] %s6
  $region1: #{tpu_custom_call.1} parent=0
    #allocation3 [shape = 'u8[131072]{0}', space=vmem, size = 0x20000, scoped, tag = 'input window, operand 3, single buffered']
    #allocation4 [shape = 's32[2]{0}', space=sflag, size = 0x8, scoped, tag = 'scoped memory for tpu_custom_call.1']
    #allocation5 [shape = 's32[2]{0}', space=sflag, size = 0x8, scoped, tag = 'scoped memory for tpu_custom_call.1']
    #allocation6 [shape = 'u8[1024]{0}', space=vmem, size = 0x400, scoped, tag = 'output window, operand 0']
    %13 = vsyncpa [#allocation4], 0
    %14 = vsyncpa [#allocation5], 0
    %s15 = scalar_lea.sflag [#allocation5], 1
    %16 = vsyncpa %s15, 0
    loop: start=0, step=1, limit=4
    $region2: #{tpu_custom_call.1} parent=1 // loop_pre_header
      _
    $region3: #{tpu_custom_call.1} parent=1 // loop_header
      %s18 = sphi 0, %s22
      %p19 = scmp.ge.s32.totalorder %s18, 4
      %s28 = sphi 0, %s30
      %s31 = sphi 0, %s28
      %s32 = sphi 0, %s31
      %s48 = sphi 0, %s32
      %s52 = sphi 0, %s52
      %s54 = sphi 0, %s52
      %s55 = sphi 0, %s54
      %s69 = sphi 0, %s55
      %s73 = sphi 0, %s73
      %s75 = sphi 0, %s73
      %s76 = sphi 0, %s75
      %s90 = sphi 0, %s76
      %s94 = sphi 0, %s94
      %s96 = sphi 0, %s94
      %s97 = sphi 0, %s96
      %s111 = sphi 0, %s97
      %s115 = sphi 0, %s115
      %s117 = sphi 0, %s115
      %s118 = sphi 0, %s117
      %s132 = sphi 0, %s118
      %s136 = sphi 0, %s136
      %s138 = sphi 0, %s136
      %s139 = sphi 0, %s138
      %s153 = sphi 0, %s139
      %s157 = sphi 0, %s157
      %s159 = sphi 0, %s157
      %s160 = sphi 0, %s159
      %s174 = sphi 0, %s160
      %s180 = sphi 0, %s182
      %s183 = sphi 0, %s180
      %s184 = sphi 0, %s183
      %s200 = sphi 0, %s184
    $region4: #{tpu_custom_call.1} parent=1 // loop_header_branch
      %21 = sbr.rel (%p19) target = $region8
    $region5: #{tpu_custom_call.1} parent=1 // loop_body
      %s23 = ssub.s32 %s18, 1
      %s24 = ssub.s32 %s18, 2
      %s25 = sadd.s32 %s18, 1
      %s26 = ssub.s32 %s18, %s25
      %p27 = scmp.eq.s32.totalorder %s26, 0
      %s29 = sadd.s32 %s28, 1
      %s30 = scalar_select %p27, %s28, %s29
      %p33 = pneg %p27
      %p34 = scmp.eq.s32.totalorder %s18, 1
      %p35 = por %p33, %p34
      %p36 = scmp.ne.s32.totalorder %s28, %s31
      %p37 = scmp.eq.s32.totalorder %s18, 0
      %p38 = por %p36, %p37
      %p39 = scmp.ne.s32.totalorder %s28, %s31
      %p40 = scmp.eq.s32.totalorder %s23, 1
      %p41 = por %p39, %p40
      %p42 = scmp.ne.s32.totalorder %s31, %s32
      %p43 = scmp.eq.s32.totalorder %s23, 0
      %p44 = por %p42, %p43
      %p45 = scmp.ne.s32.totalorder %s31, %s32
      %p46 = scmp.eq.s32.totalorder %s24, 1
      %p47 = por %p45, %p46
      %p49 = scmp.ne.s32.totalorder %s32, %s48
      %p50 = scmp.eq.s32.totalorder %s24, 0
      %p51 = por %p49, %p50
      %s53 = sadd.s32 %s52, 1
      %p56 = scmp.eq.s32.totalorder %s18, 1
      %p57 = scmp.ne.s32.totalorder %s52, %s54
      %p58 = scmp.eq.s32.totalorder %s18, 0
      %p59 = por %p57, %p58
      %p60 = scmp.ne.s32.totalorder %s52, %s54
      %p61 = scmp.eq.s32.totalorder %s23, 1
      %p62 = por %p60, %p61
      %p63 = scmp.ne.s32.totalorder %s54, %s55
      %p64 = scmp.eq.s32.totalorder %s23, 0
      %p65 = por %p63, %p64
      %p66 = scmp.ne.s32.totalorder %s54, %s55
      %p67 = scmp.eq.s32.totalorder %s24, 1
      %p68 = por %p66, %p67
      %p70 = scmp.ne.s32.totalorder %s55, %s69
      %p71 = scmp.eq.s32.totalorder %s24, 0
      %p72 = por %p70, %p71
      %s74 = sadd.s32 %s73, 1
      %p77 = scmp.eq.s32.totalorder %s18, 1
      %p78 = scmp.ne.s32.totalorder %s73, %s75
      %p79 = scmp.eq.s32.totalorder %s18, 0
      %p80 = por %p78, %p79
      %p81 = scmp.ne.s32.totalorder %s73, %s75
      %p82 = scmp.eq.s32.totalorder %s23, 1
      %p83 = por %p81, %p82
      %p84 = scmp.ne.s32.totalorder %s75, %s76
      %p85 = scmp.eq.s32.totalorder %s23, 0
      %p86 = por %p84, %p85
      %p87 = scmp.ne.s32.totalorder %s75, %s76
      %p88 = scmp.eq.s32.totalorder %s24, 1
      %p89 = por %p87, %p88
      %p91 = scmp.ne.s32.totalorder %s76, %s90
      %p92 = scmp.eq.s32.totalorder %s24, 0
      %p93 = por %p91, %p92
      %s95 = sadd.s32 %s94, 1
      %p98 = scmp.eq.s32.totalorder %s18, 1
      %p99 = scmp.ne.s32.totalorder %s94, %s96
      %p100 = scmp.eq.s32.totalorder %s18, 0
      %p101 = por %p99, %p100
      %p102 = scmp.ne.s32.totalorder %s94, %s96
      %p103 = scmp.eq.s32.totalorder %s23, 1
      %p104 = por %p102, %p103
      %p105 = scmp.ne.s32.totalorder %s96, %s97
      %p106 = scmp.eq.s32.totalorder %s23, 0
      %p107 = por %p105, %p106
      %p108 = scmp.ne.s32.totalorder %s96, %s97
      %p109 = scmp.eq.s32.totalorder %s24, 1
      %p110 = por %p108, %p109
      %p112 = scmp.ne.s32.totalorder %s97, %s111
      %p113 = scmp.eq.s32.totalorder %s24, 0
      %p114 = por %p112, %p113
      %s116 = sadd.s32 %s115, 1
      %p119 = scmp.eq.s32.totalorder %s18, 1
      %p120 = scmp.ne.s32.totalorder %s115, %s117
      %p121 = scmp.eq.s32.totalorder %s18, 0
      %p122 = por %p120, %p121
      %p123 = scmp.ne.s32.totalorder %s115, %s117
      %p124 = scmp.eq.s32.totalorder %s23, 1
      %p125 = por %p123, %p124
      %p126 = scmp.ne.s32.totalorder %s117, %s118
      %p127 = scmp.eq.s32.totalorder %s23, 0
      %p128 = por %p126, %p127
      %p129 = scmp.ne.s32.totalorder %s117, %s118
      %p130 = scmp.eq.s32.totalorder %s24, 1
      %p131 = por %p129, %p130
      %p133 = scmp.ne.s32.totalorder %s118, %s132
      %p134 = scmp.eq.s32.totalorder %s24, 0
      %p135 = por %p133, %p134
      %s137 = sadd.s32 %s136, 1
      %p140 = scmp.eq.s32.totalorder %s18, 1
      %p141 = scmp.ne.s32.totalorder %s136, %s138
      %p142 = scmp.eq.s32.totalorder %s18, 0
      %p143 = por %p141, %p142
      %p144 = scmp.ne.s32.totalorder %s136, %s138
      %p145 = scmp.eq.s32.totalorder %s23, 1
      %p146 = por %p144, %p145
      %p147 = scmp.ne.s32.totalorder %s138, %s139
      %p148 = scmp.eq.s32.totalorder %s23, 0
      %p149 = por %p147, %p148
      %p150 = scmp.ne.s32.totalorder %s138, %s139
      %p151 = scmp.eq.s32.totalorder %s24, 1
      %p152 = por %p150, %p151
      %p154 = scmp.ne.s32.totalorder %s139, %s153
      %p155 = scmp.eq.s32.totalorder %s24, 0
      %p156 = por %p154, %p155
      %s158 = sadd.s32 %s157, 1
      %p161 = scmp.eq.s32.totalorder %s18, 1
      %p162 = scmp.ne.s32.totalorder %s157, %s159
      %p163 = scmp.eq.s32.totalorder %s18, 0
      %p164 = por %p162, %p163
      %p165 = scmp.ne.s32.totalorder %s157, %s159
      %p166 = scmp.eq.s32.totalorder %s23, 1
      %p167 = por %p165, %p166
      %p168 = scmp.ne.s32.totalorder %s159, %s160
      %p169 = scmp.eq.s32.totalorder %s23, 0
      %p170 = por %p168, %p169
      %p171 = scmp.ne.s32.totalorder %s159, %s160
      %p172 = scmp.eq.s32.totalorder %s24, 1
      %p173 = por %p171, %p172
      %p175 = scmp.ne.s32.totalorder %s160, %s174
      %p176 = scmp.eq.s32.totalorder %s24, 0
      %p177 = por %p175, %p176
      %s178 = ssub.s32 %s18, %s25
      %p179 = scmp.eq.s32.totalorder %s178, 0
      %s181 = sadd.s32 %s180, 1
      %s182 = scalar_select %p179, %s180, %s181
      %p185 = pneg %p179
      %p186 = scmp.eq.s32.totalorder %s18, 1
      %p187 = por %p185, %p186
      %p188 = scmp.ne.s32.totalorder %s180, %s183
      %p189 = scmp.eq.s32.totalorder %s18, 0
      %p190 = por %p188, %p189
      %p191 = scmp.ne.s32.totalorder %s180, %s183
      %p192 = scmp.eq.s32.totalorder %s23, 1
      %p193 = por %p191, %p192
      %p194 = scmp.ne.s32.totalorder %s183, %s184
      %p195 = scmp.eq.s32.totalorder %s23, 0
      %p196 = por %p194, %p195
      %p197 = scmp.ne.s32.totalorder %s183, %s184
      %p198 = scmp.eq.s32.totalorder %s24, 1
      %p199 = por %p197, %p198
      %p201 = scmp.ne.s32.totalorder %s184, %s200
      %p202 = scmp.eq.s32.totalorder %s24, 0
      %p203 = por %p201, %p202
      %p204 = scmp.le.s32.totalorder 1, %s18
      %p205 = scmp.lt.s32.totalorder %s18, 3
      %p206 = pnand %p204, %p205
      %p207 = pneg %p206
      // Predicated region
      $region9: #{tpu_custom_call.1} parent=5 // pred_check
        _
      $region10: #{tpu_custom_call.1} parent=5 // pred_check_branch
        %209 = sbr.rel (%p206) target = $region12
      $region11: #{tpu_custom_call.1} parent=5 // pred_region
        %s210 = ssub.s32 %s18, 1
        // Predicated region
        $region13: #{tpu_custom_call.1} parent=11 // pred_check
          %p211 = pneg %p65
        $region14: #{tpu_custom_call.1} parent=11 // pred_check_branch
          %213 = sbr.rel (%p211) target = $region16
        $region15: #{tpu_custom_call.1} parent=11 // pred_region
          _
        $region16: #{tpu_custom_call.1} parent=11 // pred_fallthru
          _
        // Predicated region
        $region17: #{tpu_custom_call.1} parent=11 // pred_check
          %p214 = pneg %p86
        $region18: #{tpu_custom_call.1} parent=11 // pred_check_branch
          %216 = sbr.rel (%p214) target = $region20
        $region19: #{tpu_custom_call.1} parent=11 // pred_region
          _
        $region20: #{tpu_custom_call.1} parent=11 // pred_fallthru
          _
        // Predicated region
        $region21: #{tpu_custom_call.1} parent=11 // pred_check
          %p217 = pneg %p107
        $region22: #{tpu_custom_call.1} parent=11 // pred_check_branch
          %219 = sbr.rel (%p217) target = $region24
        $region23: #{tpu_custom_call.1} parent=11 // pred_region
          %s221 = ssub.s32 4096, 4096
          %222 = vsyncadd [#allocation4], %s221
          %s223 = sshll.u32 [#allocation3], 4
          %s224 = int_to_ptr.vmem [resolvable:$true] %s223
          %229 = dma.hbm_to_vmem [thread:$0]  %s3, 4096, %s224, [#allocation4], 128, 128, 8
        $region24: #{tpu_custom_call.1} parent=11 // pred_fallthru
          _
        // Predicated region
        $region25: #{tpu_custom_call.1} parent=11 // pred_check
          %p230 = pneg %p128
        $region26: #{tpu_custom_call.1} parent=11 // pred_check_branch
          %232 = sbr.rel (%p230) target = $region28
        $region27: #{tpu_custom_call.1} parent=11 // pred_region
          _
        $region28: #{tpu_custom_call.1} parent=11 // pred_fallthru
          _
        // Predicated region
        $region29: #{tpu_custom_call.1} parent=11 // pred_check
          %p233 = pneg %p149
        $region30: #{tpu_custom_call.1} parent=11 // pred_check_branch
          %235 = sbr.rel (%p233) target = $region32
        $region31: #{tpu_custom_call.1} parent=11 // pred_region
          _
        $region32: #{tpu_custom_call.1} parent=11 // pred_fallthru
          _
        // Predicated region
        $region33: #{tpu_custom_call.1} parent=11 // pred_check
          %p236 = pneg %p170
        $region34: #{tpu_custom_call.1} parent=11 // pred_check_branch
          %238 = sbr.rel (%p236) target = $region36
        $region35: #{tpu_custom_call.1} parent=11 // pred_region
          _
        $region36: #{tpu_custom_call.1} parent=11 // pred_fallthru
          _
      $region12: #{tpu_custom_call.1} parent=5 // pred_fallthru
        _
      %p239 = scmp.lt.s32.totalorder %s18, 2
      // Predicated region
      $region37: #{tpu_custom_call.1} parent=5 // pred_check
        %p240 = pneg %p239
      $region38: #{tpu_custom_call.1} parent=5 // pred_check_branch
        %242 = sbr.rel (%p240) target = $region40
      $region39: #{tpu_custom_call.1} parent=5 // pred_region
        // Predicated region
        $region41: #{tpu_custom_call.1} parent=39 // pred_check
          %p243 = pneg %p38
        $region42: #{tpu_custom_call.1} parent=39 // pred_check_branch
          %245 = sbr.rel (%p243) target = $region44
        $region43: #{tpu_custom_call.1} parent=39 // pred_region
          %s246 = smul.u32 16, %s18
          %p247 = scmp.lt.s32.totalorder %s246, 31
          %s248 = scalar_select %p247, %s246, 31
          %s249 = smul.addr %s248, 4
          %s250 = scalar_lea.vmem %s0, %s249
          %s251 = smul.u32 16, %s18
        $region44: #{tpu_custom_call.1} parent=39 // pred_fallthru
          _
      $region40: #{tpu_custom_call.1} parent=5 // pred_fallthru
        _
      %p252 = scmp.le.s32.totalorder 1, %s18
      %p253 = scmp.lt.s32.totalorder %s18, 3
      %p254 = pnand %p252, %p253
      %p255 = pneg %p254
      // Predicated region
      $region45: #{tpu_custom_call.1} parent=5 // pred_check
        _
      $region46: #{tpu_custom_call.1} parent=5 // pred_check_branch
        %257 = sbr.rel (%p254) target = $region48
      $region47: #{tpu_custom_call.1} parent=5 // pred_region
        %s258 = ssub.s32 %s18, 1
        // Predicated region
        $region49: #{tpu_custom_call.1} parent=47 // pred_check
          %p259 = pneg %p107
        $region50: #{tpu_custom_call.1} parent=47 // pred_check_branch
          %261 = sbr.rel (%p259) target = $region52
        $region51: #{tpu_custom_call.1} parent=47 // pred_region
          %262 = dma.done [#allocation4], 4096
        $region52: #{tpu_custom_call.1} parent=47 // pred_fallthru
          _
        %s263 = smul.u32 16, %s23
        %p264 = scmp.lt.s32.totalorder %s263, 31
        %s265 = scalar_select %p264, %s263, 31
        %s266 = smul.addr %s265, 4
        %s267 = scalar_lea.vmem %s0, %s266
        %p268 = pneg %p44
        %p269 = pneg %p41
        %p270 = pneg %p65
        %p271 = pneg %p62
        %p272 = pneg %p86
        %p273 = pneg %p83
        %p274 = pneg %p107
        %p275 = pneg %p104
        %p276 = pneg %p128
        %p277 = pneg %p125
        %p278 = pneg %p149
        %p279 = pneg %p146
        %p280 = pneg %p170
        %p281 = pneg %p167
        %p282 = pneg %p196
        %p283 = pneg %p193
        %s284 = sand.u32 %s183, 1
        %s285 = scalar_lea.sflag [#allocation5], %s284
        %s286 = sand.u32 %s183, 1
        %s287 = scalar_lea.vmem [#allocation6], %s286
        %s288 = smul.u32 16, %s23
        %p289 = scmp.lt.s32.totalorder %s288, 31
        %s290 = scalar_select %p289, %s288, 31
        %s291 = smul.addr %s290, 4
        %s292 = scalar_lea.vmem %s0, %s291
        %s293 = smul.u32 16, %s23
        %v295 = vld [vmem:[%s292] sm:$0xf]
        %v296 = vld [vmem:[%s292 + $0x4] sm:$0xf]
        %v297 = vld [vmem:[%s292 + $0x8] sm:$0xf]
        %v298 = vld [vmem:[%s292 + $0xc] sm:$0xf]
        %v299 = vld [vmem:[%s292 + $0x10] sm:$0xf]
        %v300 = vld [vmem:[%s292 + $0x14] sm:$0xf]
        %v301 = vld [vmem:[%s292 + $0x18] sm:$0xf]
        %v302 = vld [vmem:[%s292 + $0x1c] sm:$0xf]
        %v303 = vld [vmem:[%s292 + $0x20] sm:$0xf]
        %v304 = vld [vmem:[%s292 + $0x24] sm:$0xf]
        %v305 = vld [vmem:[%s292 + $0x28] sm:$0xf]
        %v306 = vld [vmem:[%s292 + $0x2c] sm:$0xf]
        %v307 = vld [vmem:[%s292 + $0x30] sm:$0xf]
        %v308 = vld [vmem:[%s292 + $0x34] sm:$0xf]
        %v309 = vld [vmem:[%s292 + $0x38] sm:$0xf]
        %v310 = vld [vmem:[%s292 + $0x3c] sm:$0xf]
        %v311 = vld [vmem:[%s1] sm:$0xff]
        %v312 = vld [vmem:[%s1 + $0x8] sm:$0xff]
        %v313 = vld [vmem:[%s1 + $0x10] sm:$0xff]
        %v314 = vld [vmem:[%s1 + $0x18] sm:$0xff]
        %v315 = vld [vmem:[%s2] sm:$0x3]
        %v317 = vlaneseq
        %v318 = vshrl.u32 %v317, 7
        %v319 = vsub.s32 0, %v318
        %v320 = vrot.slane %v315, %v319
        %v321 = vlaneseq
        %v322 = vshrl.u32 %v321, 7
        %v323 = vsub.s32 1, %v322
        %v324 = vrot.slane %v315, %v323
        %v343 = vunpack.c.l.b16 %v295
        %v344 = vunpack.c.l.b16 %v296
        %v345 = vunpack.c.l.b16 %v297
        %v346 = vunpack.c.l.b16 %v298
        %v347 = vunpack.c.l.b16 %v299
        %v348 = vunpack.c.l.b16 %v300
        %v349 = vunpack.c.l.b16 %v301
        %v350 = vunpack.c.l.b16 %v302
        %v351 = vunpack.c.l.b16 %v303
        %v352 = vunpack.c.l.b16 %v304
        %v353 = vunpack.c.l.b16 %v305
        %v354 = vunpack.c.l.b16 %v306
        %v355 = vunpack.c.l.b16 %v307
        %v356 = vunpack.c.l.b16 %v308
        %v357 = vunpack.c.l.b16 %v309
        %v358 = vunpack.c.l.b16 %v310
        %v359 = vpack.c.b16 %v344, %v343
        %v360 = vpack.c.b16 %v346, %v345
        %v361 = vpack.c.b16 %v348, %v347
        %v362 = vpack.c.b16 %v350, %v349
        %v363 = vpack.c.b16 %v352, %v351
        %v364 = vpack.c.b16 %v354, %v353
        %v365 = vpack.c.b16 %v356, %v355
        %v366 = vpack.c.b16 %v358, %v357
        %v371 = vunpack.c.l.b16 %v311
        %v372 = vunpack.c.h.b16 %v311
        %v373 = vunpack.c.l.b16 %v312
        %v374 = vunpack.c.h.b16 %v312
        %v375 = vunpack.c.l.b16 %v313
        %v376 = vunpack.c.h.b16 %v313
        %v377 = vunpack.c.l.b16 %v314
        %v378 = vunpack.c.h.b16 %v314
        %v379 = vpack.c.b16 %v373, %v371
        %v380 = vpack.c.b16 %v374, %v372
        %v381 = vpack.c.b16 %v377, %v375
        %v382 = vpack.c.b16 %v378, %v376
        %vm387 = vcmask 261120
        %v389 = vsel %vm387, %v359, 0
        %v392 = vsel %vm387, %v360, 0
        %v395 = vsel %vm387, %v361, 0
        %v398 = vsel %vm387, %v362, 0
        %v401 = vsel %vm387, %v363, 0
        %v404 = vsel %vm387, %v364, 0
        %v407 = vsel %vm387, %v365, 0
        %v410 = vsel %vm387, %v366, 0
        %412 = vmatprep.subr.bf16.mxu0 0
        %413 = vmatpush1.bf16.msra.mxu0 0
        %414 = vmatprep.subr.bf16.mxu0 0
        %415 = vmatpush1.bf16.msra.mxu0 0
        %416 = vmatprep.subr.bf16.mxu0 0
        %417 = vmatpush1.bf16.msra.mxu0 0
        %418 = vmatprep.subr.bf16.mxu0 0
        %419 = vmatpush1.bf16.msra.mxu0 0
        %420 = vmatprep.subr.bf16.mxu0 0
        %421 = vmatpush1.bf16.msra.mxu0 0
        %422 = vmatprep.subr.bf16.mxu0 0
        %423 = vmatpush1.bf16.msra.mxu0 0
        %424 = vmatprep.subr.bf16.mxu0 %v382
        %425 = vmatpush1.bf16.msra.mxu0 %v381
        %426 = vmatprep.subr.bf16.mxu0 %v380
        %427 = vmatpush1.bf16.msra.mxu0 %v379
        %428 = vmatprep.subr.bf16.mxu0 0
        %429 = vmatpush2.bf16.msra.mxu0 0
        %430 = vmatprep.subr.bf16.mxu0 0
        %431 = vmatpush2.bf16.msra.mxu0 0
        %432 = vmatprep.subr.bf16.mxu0 0
        %433 = vmatpush2.bf16.msra.mxu0 0
        %434 = vmatprep.subr.bf16.mxu0 0
        %435 = vmatpush2.bf16.msra.mxu0 0
        %436 = vmatprep.subr.bf16.mxu0 0
        %437 = vmatpush2.bf16.msra.mxu0 0
        %438 = vmatprep.subr.bf16.mxu0 0
        %439 = vmatpush2.bf16.msra.mxu0 0
        %440 = vmatprep.subr.bf16.mxu0 0
        %441 = vmatpush2.bf16.msra.mxu0 0
        %442 = vmatprep.subr.bf16.mxu0 0
        %443 = vmatpush2.bf16.msra.mxu0 0
        %444 = vmatprep.mubr.bf16.mxu0 0
        %445 = vmatmul.mubr.bf16.gmra.mxu0 %v389
        %v446 = vpop.f32.mrf.mxu0
        %v447 = vadd.f32 %v320, %v446
        %v448 = vpop.f32.mrf.mxu0
        %v449 = vadd.f32 %v324, %v448
        %v450 = vpop.f32.mrf.mxu0
        %v451 = vadd.f32 %v320, %v450
        %v452 = vpop.f32.mrf.mxu0
        %v453 = vadd.f32 %v324, %v452
        %454 = vmatprep.mubr.bf16.mxu0 0
        %455 = vmatmul.mubr.bf16.gmra.mxu0 %v392
        %v456 = vpop.f32.mrf.mxu0
        %v457 = vadd.f32 %v320, %v456
        %v458 = vpop.f32.mrf.mxu0
        %v459 = vadd.f32 %v324, %v458
        %v460 = vpop.f32.mrf.mxu0
        %v461 = vadd.f32 %v320, %v460
        %v462 = vpop.f32.mrf.mxu0
        %v463 = vadd.f32 %v324, %v462
        %464 = vmatprep.mubr.bf16.mxu0 0
        %465 = vmatmul.mubr.bf16.gmra.mxu0 %v395
        %v466 = vpop.f32.mrf.mxu0
        %v467 = vadd.f32 %v320, %v466
        %v468 = vpop.f32.mrf.mxu0
        %v469 = vadd.f32 %v324, %v468
        %v470 = vpop.f32.mrf.mxu0
        %v471 = vadd.f32 %v320, %v470
        %v472 = vpop.f32.mrf.mxu0
        %v473 = vadd.f32 %v324, %v472
        %474 = vmatprep.mubr.bf16.mxu0 0
        %475 = vmatmul.mubr.bf16.gmra.mxu0 %v398
        %v476 = vpop.f32.mrf.mxu0
        %v477 = vadd.f32 %v320, %v476
        %v478 = vpop.f32.mrf.mxu0
        %v479 = vadd.f32 %v324, %v478
        %v480 = vpop.f32.mrf.mxu0
        %v481 = vadd.f32 %v320, %v480
        %v482 = vpop.f32.mrf.mxu0
        %v483 = vadd.f32 %v324, %v482
        %484 = vmatprep.mubr.bf16.mxu0 0
        %485 = vmatmul.mubr.bf16.gmra.mxu0 %v401
        %v486 = vpop.f32.mrf.mxu0
        %v487 = vadd.f32 %v320, %v486
        %v488 = vpop.f32.mrf.mxu0
        %v489 = vadd.f32 %v324, %v488
        %v490 = vpop.f32.mrf.mxu0
        %v491 = vadd.f32 %v320, %v490
        %v492 = vpop.f32.mrf.mxu0
        %v493 = vadd.f32 %v324, %v492
        %494 = vmatprep.mubr.bf16.mxu0 0
        %495 = vmatmul.mubr.bf16.gmra.mxu0 %v404
        %v496 = vpop.f32.mrf.mxu0
        %v497 = vadd.f32 %v320, %v496
        %v498 = vpop.f32.mrf.mxu0
        %v499 = vadd.f32 %v324, %v498
        %v500 = vpop.f32.mrf.mxu0
        %v501 = vadd.f32 %v320, %v500
        %v502 = vpop.f32.mrf.mxu0
        %v503 = vadd.f32 %v324, %v502
        %504 = vmatprep.mubr.bf16.mxu0 0
        %505 = vmatmul.mubr.bf16.gmra.mxu0 %v407
        %v506 = vpop.f32.mrf.mxu0
        %v507 = vadd.f32 %v320, %v506
        %v508 = vpop.f32.mrf.mxu0
        %v509 = vadd.f32 %v324, %v508
        %v510 = vpop.f32.mrf.mxu0
        %v511 = vadd.f32 %v320, %v510
        %v512 = vpop.f32.mrf.mxu0
        %v513 = vadd.f32 %v324, %v512
        %514 = vmatprep.mubr.bf16.mxu0 0
        %515 = vmatmul.mubr.bf16.gmra.mxu0 %v410
        %v516 = vpop.f32.mrf.mxu0
        %v517 = vadd.f32 %v320, %v516
        %v518 = vpop.f32.mrf.mxu0
        %v519 = vadd.f32 %v324, %v518
        %v520 = vpop.f32.mrf.mxu0
        %v521 = vadd.f32 %v320, %v520
        %v522 = vpop.f32.mrf.mxu0
        %v523 = vadd.f32 %v324, %v522
        %524 = vdwg.mxu0
        %v525 = vmax.f32 %v447, 0.0
        %v526 = vmax.f32 %v449, 0.0
        %v527 = vmax.f32 %v451, 0.0
        %v528 = vmax.f32 %v453, 0.0
        %v529 = vmax.f32 %v457, 0.0
        %v530 = vmax.f32 %v459, 0.0
        %v531 = vmax.f32 %v461, 0.0
        %v532 = vmax.f32 %v463, 0.0
        %v533 = vmax.f32 %v467, 0.0
        %v534 = vmax.f32 %v469, 0.0
        %v535 = vmax.f32 %v471, 0.0
        %v536 = vmax.f32 %v473, 0.0
        %v537 = vmax.f32 %v477, 0.0
        %v538 = vmax.f32 %v479, 0.0
        %v539 = vmax.f32 %v481, 0.0
        %v540 = vmax.f32 %v483, 0.0
        %v541 = vmax.f32 %v487, 0.0
        %v542 = vmax.f32 %v489, 0.0
        %v543 = vmax.f32 %v491, 0.0
        %v544 = vmax.f32 %v493, 0.0
        %v545 = vmax.f32 %v497, 0.0
        %v546 = vmax.f32 %v499, 0.0
        %v547 = vmax.f32 %v501, 0.0
        %v548 = vmax.f32 %v503, 0.0
        %v549 = vmax.f32 %v507, 0.0
        %v550 = vmax.f32 %v509, 0.0
        %v551 = vmax.f32 %v511, 0.0
        %v552 = vmax.f32 %v513, 0.0
        %v553 = vmax.f32 %v517, 0.0
        %v554 = vmax.f32 %v519, 0.0
        %v555 = vmax.f32 %v521, 0.0
        %v556 = vmax.f32 %v523, 0.0
        %v557 = vpack.c.bf16 %v527, %v525
        %v558 = vpack.c.bf16 %v528, %v526
        %v559 = vpack.c.bf16 %v531, %v529
        %v560 = vpack.c.bf16 %v532, %v530
        %v561 = vpack.c.bf16 %v535, %v533
        %v562 = vpack.c.bf16 %v536, %v534
        %v563 = vpack.c.bf16 %v539, %v537
        %v564 = vpack.c.bf16 %v540, %v538
        %v565 = vpack.c.bf16 %v543, %v541
        %v566 = vpack.c.bf16 %v544, %v542
        %v567 = vpack.c.bf16 %v547, %v545
        %v568 = vpack.c.bf16 %v548, %v546
        %v569 = vpack.c.bf16 %v551, %v549
        %v570 = vpack.c.bf16 %v552, %v550
        %v571 = vpack.c.bf16 %v555, %v553
        %v572 = vpack.c.bf16 %v556, %v554
        %v573 = vld [vmem:[#allocation3] sm:$0xff]
        %v574 = vld [vmem:[#allocation3 + $0x8] sm:$0xff]
        %v575 = vld [vmem:[#allocation3 + $0x10] sm:$0xff]
        %v576 = vld [vmem:[#allocation3 + $0x18] sm:$0xff]
        %v577 = vld [vmem:[#allocation3 + $0x20] sm:$0xff]
        %v578 = vld [vmem:[#allocation3 + $0x28] sm:$0xff]
        %v579 = vld [vmem:[#allocation3 + $0x30] sm:$0xff]
        %v580 = vld [vmem:[#allocation3 + $0x38] sm:$0xff]
        %v581 = vld [vmem:[#allocation3 + $0x40] sm:$0xff]
        %v582 = vld [vmem:[#allocation3 + $0x48] sm:$0xff]
        %v583 = vld [vmem:[#allocation3 + $0x50] sm:$0xff]
        %v584 = vld [vmem:[#allocation3 + $0x58] sm:$0xff]
        %v585 = vld [vmem:[#allocation3 + $0x60] sm:$0xff]
        %v586 = vld [vmem:[#allocation3 + $0x68] sm:$0xff]
        %v587 = vld [vmem:[#allocation3 + $0x70] sm:$0xff]
        %v588 = vld [vmem:[#allocation3 + $0x78] sm:$0xff]
        %v589 = vld [vmem:[#allocation3 + $0x80] sm:$0xff]
        %v590 = vld [vmem:[#allocation3 + $0x88] sm:$0xff]
        %v591 = vld [vmem:[#allocation3 + $0x90] sm:$0xff]
        %v592 = vld [vmem:[#allocation3 + $0x98] sm:$0xff]
        %v593 = vld [vmem:[#allocation3 + $0xa0] sm:$0xff]
        %v594 = vld [vmem:[#allocation3 + $0xa8] sm:$0xff]
        %v595 = vld [vmem:[#allocation3 + $0xb0] sm:$0xff]
        %v596 = vld [vmem:[#allocation3 + $0xb8] sm:$0xff]
        %v597 = vld [vmem:[#allocation3 + $0xc0] sm:$0xff]
        %v598 = vld [vmem:[#allocation3 + $0xc8] sm:$0xff]
        %v599 = vld [vmem:[#allocation3 + $0xd0] sm:$0xff]
        %v600 = vld [vmem:[#allocation3 + $0xd8] sm:$0xff]
        %v601 = vld [vmem:[#allocation3 + $0xe0] sm:$0xff]
        %v602 = vld [vmem:[#allocation3 + $0xe8] sm:$0xff]
        %v603 = vld [vmem:[#allocation3 + $0xf0] sm:$0xff]
        %v604 = vld [vmem:[#allocation3 + $0xf8] sm:$0xff]
        %v605 = vld [vmem:[%s4] sm:$0x3]
        %v607 = vlaneseq
        %v608 = vshrl.u32 %v607, 7
        %v609 = vsub.s32 0, %v608
        %v610 = vrot.slane %v605, %v609
        %v611 = vlaneseq
        %v612 = vshrl.u32 %v611, 7
        %v613 = vsub.s32 1, %v612
        %v614 = vrot.slane %v605, %v613
        %v649 = vunpack.c.l.b16 %v573
        %v650 = vunpack.c.h.b16 %v573
        %v651 = vunpack.c.l.b16 %v574
        %v652 = vunpack.c.h.b16 %v574
        %v653 = vunpack.c.l.b16 %v575
        %v654 = vunpack.c.h.b16 %v575
        %v655 = vunpack.c.l.b16 %v576
        %v656 = vunpack.c.h.b16 %v576
        %v657 = vunpack.c.l.b16 %v577
        %v658 = vunpack.c.h.b16 %v577
        %v659 = vunpack.c.l.b16 %v578
        %v660 = vunpack.c.h.b16 %v578
        %v661 = vunpack.c.l.b16 %v579
        %v662 = vunpack.c.h.b16 %v579
        %v663 = vunpack.c.l.b16 %v580
        %v664 = vunpack.c.h.b16 %v580
        %v665 = vunpack.c.l.b16 %v581
        %v666 = vunpack.c.h.b16 %v581
        %v667 = vunpack.c.l.b16 %v582
        %v668 = vunpack.c.h.b16 %v582
        %v669 = vunpack.c.l.b16 %v583
        %v670 = vunpack.c.h.b16 %v583
        %v671 = vunpack.c.l.b16 %v584
        %v672 = vunpack.c.h.b16 %v584
        %v673 = vunpack.c.l.b16 %v585
        %v674 = vunpack.c.h.b16 %v585
        %v675 = vunpack.c.l.b16 %v586
        %v676 = vunpack.c.h.b16 %v586
        %v677 = vunpack.c.l.b16 %v587
        %v678 = vunpack.c.h.b16 %v587
        %v679 = vunpack.c.l.b16 %v588
        %v680 = vunpack.c.h.b16 %v588
        %v681 = vunpack.c.l.b16 %v589
        %v682 = vunpack.c.h.b16 %v589
        %v683 = vunpack.c.l.b16 %v590
        %v684 = vunpack.c.h.b16 %v590
        %v685 = vunpack.c.l.b16 %v591
        %v686 = vunpack.c.h.b16 %v591
        %v687 = vunpack.c.l.b16 %v592
        %v688 = vunpack.c.h.b16 %v592
        %v689 = vunpack.c.l.b16 %v593
        %v690 = vunpack.c.h.b16 %v593
        %v691 = vunpack.c.l.b16 %v594
        %v692 = vunpack.c.h.b16 %v594
        %v693 = vunpack.c.l.b16 %v595
        %v694 = vunpack.c.h.b16 %v595
        %v695 = vunpack.c.l.b16 %v596
        %v696 = vunpack.c.h.b16 %v596
        %v697 = vunpack.c.l.b16 %v597
        %v698 = vunpack.c.h.b16 %v597
        %v699 = vunpack.c.l.b16 %v598
        %v700 = vunpack.c.h.b16 %v598
        %v701 = vunpack.c.l.b16 %v599
        %v702 = vunpack.c.h.b16 %v599
        %v703 = vunpack.c.l.b16 %v600
        %v704 = vunpack.c.h.b16 %v600
        %v705 = vunpack.c.l.b16 %v601
        %v706 = vunpack.c.h.b16 %v601
        %v707 = vunpack.c.l.b16 %v602
        %v708 = vunpack.c.h.b16 %v602
        %v709 = vunpack.c.l.b16 %v603
        %v710 = vunpack.c.h.b16 %v603
        %v711 = vunpack.c.l.b16 %v604
        %v712 = vunpack.c.h.b16 %v604
        %v713 = vpack.c.b16 %v651, %v649
        %v714 = vpack.c.b16 %v652, %v650
        %v715 = vpack.c.b16 %v655, %v653
        %v716 = vpack.c.b16 %v656, %v654
        %v717 = vpack.c.b16 %v659, %v657
        %v718 = vpack.c.b16 %v660, %v658
        %v719 = vpack.c.b16 %v663, %v661
        %v720 = vpack.c.b16 %v664, %v662
        %v721 = vpack.c.b16 %v667, %v665
        %v722 = vpack.c.b16 %v668, %v666
        %v723 = vpack.c.b16 %v671, %v669
        %v724 = vpack.c.b16 %v672, %v670
        %v725 = vpack.c.b16 %v675, %v673
        %v726 = vpack.c.b16 %v676, %v674
        %v727 = vpack.c.b16 %v679, %v677
        %v728 = vpack.c.b16 %v680, %v678
        %v729 = vpack.c.b16 %v683, %v681
        %v730 = vpack.c.b16 %v684, %v682
        %v731 = vpack.c.b16 %v687, %v685
        %v732 = vpack.c.b16 %v688, %v686
        %v733 = vpack.c.b16 %v691, %v689
        %v734 = vpack.c.b16 %v692, %v690
        %v735 = vpack.c.b16 %v695, %v693
        %v736 = vpack.c.b16 %v696, %v694
        %v737 = vpack.c.b16 %v699, %v697
        %v738 = vpack.c.b16 %v700, %v698
        %v739 = vpack.c.b16 %v703, %v701
        %v740 = vpack.c.b16 %v704, %v702
        %v741 = vpack.c.b16 %v707, %v705
        %v742 = vpack.c.b16 %v708, %v706
        %v743 = vpack.c.b16 %v711, %v709
        %v744 = vpack.c.b16 %v712, %v710
        %777 = vmatprep.subr.bf16.mxu0 %v728
        %778 = vmatpush1.bf16.msra.mxu0 %v727
        %779 = vmatprep.subr.bf16.mxu0 %v726
        %780 = vmatpush1.bf16.msra.mxu0 %v725
        %781 = vmatprep.subr.bf16.mxu0 %v724
        %782 = vmatpush1.bf16.msra.mxu0 %v723
        %783 = vmatprep.subr.bf16.mxu0 %v722
        %784 = vmatpush1.bf16.msra.mxu0 %v721
        %785 = vmatprep.subr.bf16.mxu0 %v720
        %786 = vmatpush1.bf16.msra.mxu0 %v719
        %787 = vmatprep.subr.bf16.mxu0 %v718
        %788 = vmatpush1.bf16.msra.mxu0 %v717
        %789 = vmatprep.subr.bf16.mxu0 %v716
        %790 = vmatpush1.bf16.msra.mxu0 %v715
        %791 = vmatprep.subr.bf16.mxu0 %v714
        %792 = vmatpush1.bf16.msra.mxu0 %v713
        %793 = vmatprep.subr.bf16.mxu0 %v744
        %794 = vmatpush2.bf16.msra.mxu0 %v743
        %795 = vmatprep.subr.bf16.mxu0 %v742
        %796 = vmatpush2.bf16.msra.mxu0 %v741
        %797 = vmatprep.subr.bf16.mxu0 %v740
        %798 = vmatpush2.bf16.msra.mxu0 %v739
        %799 = vmatprep.subr.bf16.mxu0 %v738
        %800 = vmatpush2.bf16.msra.mxu0 %v737
        %801 = vmatprep.subr.bf16.mxu0 %v736
        %802 = vmatpush2.bf16.msra.mxu0 %v735
        %803 = vmatprep.subr.bf16.mxu0 %v734
        %804 = vmatpush2.bf16.msra.mxu0 %v733
        %805 = vmatprep.subr.bf16.mxu0 %v732
        %806 = vmatpush2.bf16.msra.mxu0 %v731
        %807 = vmatprep.subr.bf16.mxu0 %v730
        %808 = vmatpush2.bf16.msra.mxu0 %v729
        %809 = vmatprep.mubr.bf16.mxu0 %v558
        %810 = vmatmul.mubr.bf16.gmra.mxu0 %v557
        %v811 = vpop.f32.mrf.mxu0
        %v812 = vadd.f32 %v610, %v811
        %v813 = vpop.f32.mrf.mxu0
        %v814 = vadd.f32 %v614, %v813
        %v815 = vpop.f32.mrf.mxu0
        %v816 = vadd.f32 %v610, %v815
        %v817 = vpop.f32.mrf.mxu0
        %v818 = vadd.f32 %v614, %v817
        %819 = vmatprep.mubr.bf16.mxu0 %v560
        %820 = vmatmul.mubr.bf16.gmra.mxu0 %v559
        %v821 = vpop.f32.mrf.mxu0
        %v822 = vadd.f32 %v610, %v821
        %v823 = vpop.f32.mrf.mxu0
        %v824 = vadd.f32 %v614, %v823
        %v825 = vpop.f32.mrf.mxu0
        %v826 = vadd.f32 %v610, %v825
        %v827 = vpop.f32.mrf.mxu0
        %v828 = vadd.f32 %v614, %v827
        %829 = vmatprep.mubr.bf16.mxu0 %v562
        %830 = vmatmul.mubr.bf16.gmra.mxu0 %v561
        %v831 = vpop.f32.mrf.mxu0
        %v832 = vadd.f32 %v610, %v831
        %v833 = vpop.f32.mrf.mxu0
        %v834 = vadd.f32 %v614, %v833
        %v835 = vpop.f32.mrf.mxu0
        %v836 = vadd.f32 %v610, %v835
        %v837 = vpop.f32.mrf.mxu0
        %v838 = vadd.f32 %v614, %v837
        %839 = vmatprep.mubr.bf16.mxu0 %v564
        %840 = vmatmul.mubr.bf16.gmra.mxu0 %v563
        %v841 = vpop.f32.mrf.mxu0
        %v842 = vadd.f32 %v610, %v841
        %v843 = vpop.f32.mrf.mxu0
        %v844 = vadd.f32 %v614, %v843
        %v845 = vpop.f32.mrf.mxu0
        %v846 = vadd.f32 %v610, %v845
        %v847 = vpop.f32.mrf.mxu0
        %v848 = vadd.f32 %v614, %v847
        %849 = vmatprep.mubr.bf16.mxu0 %v566
        %850 = vmatmul.mubr.bf16.gmra.mxu0 %v565
        %v851 = vpop.f32.mrf.mxu0
        %v852 = vadd.f32 %v610, %v851
        %v853 = vpop.f32.mrf.mxu0
        %v854 = vadd.f32 %v614, %v853
        %v855 = vpop.f32.mrf.mxu0
        %v856 = vadd.f32 %v610, %v855
        %v857 = vpop.f32.mrf.mxu0
        %v858 = vadd.f32 %v614, %v857
        %859 = vmatprep.mubr.bf16.mxu0 %v568
        %860 = vmatmul.mubr.bf16.gmra.mxu0 %v567
        %v861 = vpop.f32.mrf.mxu0
        %v862 = vadd.f32 %v610, %v861
        %v863 = vpop.f32.mrf.mxu0
        %v864 = vadd.f32 %v614, %v863
        %v865 = vpop.f32.mrf.mxu0
        %v866 = vadd.f32 %v610, %v865
        %v867 = vpop.f32.mrf.mxu0
        %v868 = vadd.f32 %v614, %v867
        %869 = vmatprep.mubr.bf16.mxu0 %v570
        %870 = vmatmul.mubr.bf16.gmra.mxu0 %v569
        %v871 = vpop.f32.mrf.mxu0
        %v872 = vadd.f32 %v610, %v871
        %v873 = vpop.f32.mrf.mxu0
        %v874 = vadd.f32 %v614, %v873
        %v875 = vpop.f32.mrf.mxu0
        %v876 = vadd.f32 %v610, %v875
        %v877 = vpop.f32.mrf.mxu0
        %v878 = vadd.f32 %v614, %v877
        %879 = vmatprep.mubr.bf16.mxu0 %v572
        %880 = vmatmul.mubr.bf16.gmra.mxu0 %v571
        %v881 = vpop.f32.mrf.mxu0
        %v882 = vadd.f32 %v610, %v881
        %v883 = vpop.f32.mrf.mxu0
        %v884 = vadd.f32 %v614, %v883
        %v885 = vpop.f32.mrf.mxu0
        %v886 = vadd.f32 %v610, %v885
        %v887 = vpop.f32.mrf.mxu0
        %v888 = vadd.f32 %v614, %v887
        %889 = vdwg.mxu0
        %v890 = vmax.f32 %v812, 0.0
        %v891 = vmax.f32 %v814, 0.0
        %v892 = vmax.f32 %v816, 0.0
        %v893 = vmax.f32 %v818, 0.0
        %v894 = vmax.f32 %v822, 0.0
        %v895 = vmax.f32 %v824, 0.0
        %v896 = vmax.f32 %v826, 0.0
        %v897 = vmax.f32 %v828, 0.0
        %v898 = vmax.f32 %v832, 0.0
        %v899 = vmax.f32 %v834, 0.0
        %v900 = vmax.f32 %v836, 0.0
        %v901 = vmax.f32 %v838, 0.0
        %v902 = vmax.f32 %v842, 0.0
        %v903 = vmax.f32 %v844, 0.0
        %v904 = vmax.f32 %v846, 0.0
        %v905 = vmax.f32 %v848, 0.0
        %v906 = vmax.f32 %v852, 0.0
        %v907 = vmax.f32 %v854, 0.0
        %v908 = vmax.f32 %v856, 0.0
        %v909 = vmax.f32 %v858, 0.0
        %v910 = vmax.f32 %v862, 0.0
        %v911 = vmax.f32 %v864, 0.0
        %v912 = vmax.f32 %v866, 0.0
        %v913 = vmax.f32 %v868, 0.0
        %v914 = vmax.f32 %v872, 0.0
        %v915 = vmax.f32 %v874, 0.0
        %v916 = vmax.f32 %v876, 0.0
        %v917 = vmax.f32 %v878, 0.0
        %v918 = vmax.f32 %v882, 0.0
        %v919 = vmax.f32 %v884, 0.0
        %v920 = vmax.f32 %v886, 0.0
        %v921 = vmax.f32 %v888, 0.0
        %v922 = vld [vmem:[%s5] sm:$0x3]
        %v924 = vlaneseq
        %v925 = vshrl.u32 %v924, 7
        %v926 = vsub.s32 0, %v925
        %v927 = vrot.slane %v922, %v926
        %v928 = vlaneseq
        %v929 = vshrl.u32 %v928, 7
        %v930 = vsub.s32 1, %v929
        %v931 = vrot.slane %v922, %v930
        %v934 = vmul.f32 %v890, %v927
        %v935 = vmul.f32 %v891, %v931
        %v936 = vmul.f32 %v892, %v927
        %v937 = vmul.f32 %v893, %v931
        %v938 = vmul.f32 %v894, %v927
        %v939 = vmul.f32 %v895, %v931
        %v940 = vmul.f32 %v896, %v927
        %v941 = vmul.f32 %v897, %v931
        %v942 = vmul.f32 %v898, %v927
        %v943 = vmul.f32 %v899, %v931
        %v944 = vmul.f32 %v900, %v927
        %v945 = vmul.f32 %v901, %v931
        %v946 = vmul.f32 %v902, %v927
        %v947 = vmul.f32 %v903, %v931
        %v948 = vmul.f32 %v904, %v927
        %v949 = vmul.f32 %v905, %v931
        %v950 = vmul.f32 %v906, %v927
        %v951 = vmul.f32 %v907, %v931
        %v952 = vmul.f32 %v908, %v927
        %v953 = vmul.f32 %v909, %v931
        %v954 = vmul.f32 %v910, %v927
        %v955 = vmul.f32 %v911, %v931
        %v956 = vmul.f32 %v912, %v927
        %v957 = vmul.f32 %v913, %v931
        %v958 = vmul.f32 %v914, %v927
        %v959 = vmul.f32 %v915, %v931
        %v960 = vmul.f32 %v916, %v927
        %v961 = vmul.f32 %v917, %v931
        %v962 = vmul.f32 %v918, %v927
        %v963 = vmul.f32 %v919, %v931
        %v964 = vmul.f32 %v920, %v927
        %v965 = vmul.f32 %v921, %v931
        %v966 = vadd.f32 %v934, %v935
        %967 = vadd.xlane.f32.xlu0 %v966
        %v968 = vpop.xlane.xlu0 %967
        %v969 = vadd.f32 %v936, %v937
        %970 = vadd.xlane.f32.xlu0 %v969
        %v971 = vpop.xlane.xlu0 %970
        %v972 = vadd.f32 %v938, %v939
        %973 = vadd.xlane.f32.xlu0 %v972
        %v974 = vpop.xlane.xlu0 %973
        %v975 = vadd.f32 %v940, %v941
        %976 = vadd.xlane.f32.xlu0 %v975
        %v977 = vpop.xlane.xlu0 %976
        %v978 = vadd.f32 %v942, %v943
        %979 = vadd.xlane.f32.xlu0 %v978
        %v980 = vpop.xlane.xlu0 %979
        %v981 = vadd.f32 %v944, %v945
        %982 = vadd.xlane.f32.xlu0 %v981
        %v983 = vpop.xlane.xlu0 %982
        %v984 = vadd.f32 %v946, %v947
        %985 = vadd.xlane.f32.xlu0 %v984
        %v986 = vpop.xlane.xlu0 %985
        %v987 = vadd.f32 %v948, %v949
        %988 = vadd.xlane.f32.xlu0 %v987
        %v989 = vpop.xlane.xlu0 %988
        %v990 = vadd.f32 %v950, %v951
        %991 = vadd.xlane.f32.xlu0 %v990
        %v992 = vpop.xlane.xlu0 %991
        %v993 = vadd.f32 %v952, %v953
        %994 = vadd.xlane.f32.xlu0 %v993
        %v995 = vpop.xlane.xlu0 %994
        %v996 = vadd.f32 %v954, %v955
        %997 = vadd.xlane.f32.xlu0 %v996
        %v998 = vpop.xlane.xlu0 %997
        %v999 = vadd.f32 %v956, %v957
        %1000 = vadd.xlane.f32.xlu0 %v999
        %v1001 = vpop.xlane.xlu0 %1000
        %v1002 = vadd.f32 %v958, %v959
        %1003 = vadd.xlane.f32.xlu0 %v1002
        %v1004 = vpop.xlane.xlu0 %1003
        %v1005 = vadd.f32 %v960, %v961
        %1006 = vadd.xlane.f32.xlu0 %v1005
        %v1007 = vpop.xlane.xlu0 %1006
        %v1008 = vadd.f32 %v962, %v963
        %1009 = vadd.xlane.f32.xlu0 %v1008
        %v1010 = vpop.xlane.xlu0 %1009
        %v1011 = vadd.f32 %v964, %v965
        %1012 = vadd.xlane.f32.xlu0 %v1011
        %v1013 = vpop.xlane.xlu0 %1012
        %s1014 = sld [smem:[#allocation2]]
        %v1015 = vstv %s1014
        %v1016 = vadd.f32 %v968, %v1015
        %v1017 = vadd.f32 %v971, %v1015
        %v1018 = vadd.f32 %v974, %v1015
        %v1019 = vadd.f32 %v977, %v1015
        %v1020 = vadd.f32 %v980, %v1015
        %v1021 = vadd.f32 %v983, %v1015
        %v1022 = vadd.f32 %v986, %v1015
        %v1023 = vadd.f32 %v989, %v1015
        %v1024 = vadd.f32 %v992, %v1015
        %v1025 = vadd.f32 %v995, %v1015
        %v1026 = vadd.f32 %v998, %v1015
        %v1027 = vadd.f32 %v1001, %v1015
        %v1028 = vadd.f32 %v1004, %v1015
        %v1029 = vadd.f32 %v1007, %v1015
        %v1030 = vadd.f32 %v1010, %v1015
        %v1031 = vadd.f32 %v1013, %v1015
        %v1032 = vlaneseq
        %v1033 = vshrl.u32 %v1032, 7
        %v1034 = vadd.s32 %v1033, 8
        %v1035 = vadd.s32 %v1033, 16
        %v1036 = vadd.s32 %v1033, 24
        %v1037 = vadd.s32 %v1033, 32
        %v1038 = vadd.s32 %v1033, 40
        %v1039 = vadd.s32 %v1033, 48
        %v1040 = vadd.s32 %v1033, 56
        %v1041 = vadd.s32 %v1033, 64
        %v1042 = vadd.s32 %v1033, 72
        %v1043 = vadd.s32 %v1033, 80
        %v1044 = vadd.s32 %v1033, 88
        %v1045 = vadd.s32 %v1033, 96
        %v1046 = vadd.s32 %v1033, 104
        %v1047 = vadd.s32 %v1033, 112
        %v1048 = vadd.s32 %v1033, 120
        %v1049 = vlaneseq
        %v1050 = vand.u32 %v1049, 127
        %vm1051 = vcmp.eq.s32.totalorder %v1033, %v1050
        %vm1052 = vcmp.eq.s32.totalorder %v1034, %v1050
        %vm1053 = vcmp.eq.s32.totalorder %v1035, %v1050
        %vm1054 = vcmp.eq.s32.totalorder %v1036, %v1050
        %vm1055 = vcmp.eq.s32.totalorder %v1037, %v1050
        %vm1056 = vcmp.eq.s32.totalorder %v1038, %v1050
        %vm1057 = vcmp.eq.s32.totalorder %v1039, %v1050
        %vm1058 = vcmp.eq.s32.totalorder %v1040, %v1050
        %vm1059 = vcmp.eq.s32.totalorder %v1041, %v1050
        %vm1060 = vcmp.eq.s32.totalorder %v1042, %v1050
        %vm1061 = vcmp.eq.s32.totalorder %v1043, %v1050
        %vm1062 = vcmp.eq.s32.totalorder %v1044, %v1050
        %vm1063 = vcmp.eq.s32.totalorder %v1045, %v1050
        %vm1064 = vcmp.eq.s32.totalorder %v1046, %v1050
        %vm1065 = vcmp.eq.s32.totalorder %v1047, %v1050
        %vm1066 = vcmp.eq.s32.totalorder %v1048, %v1050
        %v1067 = vsel %vm1051, 1, 0
        %v1068 = vsel %vm1052, 1, 0
        %v1069 = vsel %vm1053, 1, 0
        %v1070 = vsel %vm1054, 1, 0
        %v1071 = vsel %vm1055, 1, 0
        %v1072 = vsel %vm1056, 1, 0
        %v1073 = vsel %vm1057, 1, 0
        %v1074 = vsel %vm1058, 1, 0
        %v1075 = vsel %vm1059, 1, 0
        %v1076 = vsel %vm1060, 1, 0
        %v1077 = vsel %vm1061, 1, 0
        %v1078 = vsel %vm1062, 1, 0
        %v1079 = vsel %vm1063, 1, 0
        %v1080 = vsel %vm1064, 1, 0
        %v1081 = vsel %vm1065, 1, 0
        %v1082 = vsel %vm1066, 1, 0
        %v1083 = vcvt.s32.f32 %v1067
        %v1084 = vcvt.s32.f32 %v1068
        %v1085 = vcvt.s32.f32 %v1069
        %v1086 = vcvt.s32.f32 %v1070
        %v1087 = vcvt.s32.f32 %v1071
        %v1088 = vcvt.s32.f32 %v1072
        %v1089 = vcvt.s32.f32 %v1073
        %v1090 = vcvt.s32.f32 %v1074
        %v1091 = vcvt.s32.f32 %v1075
        %v1092 = vcvt.s32.f32 %v1076
        %v1093 = vcvt.s32.f32 %v1077
        %v1094 = vcvt.s32.f32 %v1078
        %v1095 = vcvt.s32.f32 %v1079
        %v1096 = vcvt.s32.f32 %v1080
        %v1097 = vcvt.s32.f32 %v1081
        %v1098 = vcvt.s32.f32 %v1082
        %v1099 = vmul.f32 %v1016, %v1083
        %v1100 = vmul.f32 %v1017, %v1084
        %v1101 = vmul.f32 %v1018, %v1085
        %v1102 = vmul.f32 %v1019, %v1086
        %v1103 = vmul.f32 %v1020, %v1087
        %v1104 = vmul.f32 %v1021, %v1088
        %v1105 = vmul.f32 %v1022, %v1089
        %v1106 = vmul.f32 %v1023, %v1090
        %v1107 = vmul.f32 %v1024, %v1091
        %v1108 = vmul.f32 %v1025, %v1092
        %v1109 = vmul.f32 %v1026, %v1093
        %v1110 = vmul.f32 %v1027, %v1094
        %v1111 = vmul.f32 %v1028, %v1095
        %v1112 = vmul.f32 %v1029, %v1096
        %v1113 = vmul.f32 %v1030, %v1097
        %v1114 = vmul.f32 %v1031, %v1098
        %v1115 = vadd.f32 %v1099, %v1100
        %v1116 = vadd.f32 %v1115, %v1101
        %v1117 = vadd.f32 %v1116, %v1102
        %v1118 = vadd.f32 %v1117, %v1103
        %v1119 = vadd.f32 %v1118, %v1104
        %v1120 = vadd.f32 %v1119, %v1105
        %v1121 = vadd.f32 %v1120, %v1106
        %v1122 = vadd.f32 %v1121, %v1107
        %v1123 = vadd.f32 %v1122, %v1108
        %v1124 = vadd.f32 %v1123, %v1109
        %v1125 = vadd.f32 %v1124, %v1110
        %v1126 = vadd.f32 %v1125, %v1111
        %v1127 = vadd.f32 %v1126, %v1112
        %v1128 = vadd.f32 %v1127, %v1113
        %v1129 = vadd.f32 %v1128, %v1114
        %v1130 = vrot.slane %v1129, 4
        %v1131 = vadd.f32 %v1129, %v1130
        %v1132 = vrot.slane %v1131, 2
        %v1133 = vadd.f32 %v1131, %v1132
        %v1134 = vrot.slane %v1133, 1
        %v1135 = vadd.f32 %v1133, %v1134
        %1136 = vst [vmem:[%s287] sm:$0x1] %v1135
        %s1137 = sand.u32 %s183, 1
        %s1138 = scalar_lea.sflag [#allocation5], %s1137
        %s1139 = sand.u32 %s183, 1
        %s1140 = scalar_lea.vmem [#allocation6], %s1139
        // Predicated region
        $region53: #{tpu_custom_call.1} parent=47 // pred_check
          %p1141 = pneg %p193
        $region54: #{tpu_custom_call.1} parent=47 // pred_check_branch
          %1143 = sbr.rel (%p1141) target = $region56
        $region55: #{tpu_custom_call.1} parent=47 // pred_region
          %s1145 = ssub.s32 16, 16
          %1146 = vsyncadd %s1138, %s1145
          %s1147 = smul.addr %s23, 16
          %s1148 = scalar_lea.hbm %s7, %s1147
          %s1150 = sshll.u32 %s1140, 4
          %s1151 = int_to_ptr.vmem [resolvable:$true] %s1150
          %1153 = dma.vmem_to_hbm [thread:$0]  %s1151, 16, %s1148, %s1138
        $region56: #{tpu_custom_call.1} parent=47 // pred_fallthru
          _
      $region48: #{tpu_custom_call.1} parent=5 // pred_fallthru
        _
      %p1154 = scmp.le.s32.totalorder 2, %s18
      // Predicated region
      $region57: #{tpu_custom_call.1} parent=5 // pred_check
        %p1155 = pneg %p1154
      $region58: #{tpu_custom_call.1} parent=5 // pred_check_branch
        %1157 = sbr.rel (%p1155) target = $region60
      $region59: #{tpu_custom_call.1} parent=5 // pred_region
        %s1158 = ssub.s32 %s18, 2
        // Predicated region
        $region61: #{tpu_custom_call.1} parent=59 // pred_check
          %p1159 = pneg %p199
        $region62: #{tpu_custom_call.1} parent=59 // pred_check_branch
          %1161 = sbr.rel (%p1159) target = $region64
        $region63: #{tpu_custom_call.1} parent=59 // pred_region
          %s1162 = sand.u32 %s184, 1
          %s1163 = scalar_lea.sflag [#allocation5], %s1162
          %s1164 = sand.u32 %s184, 1
          %s1165 = scalar_lea.vmem [#allocation6], %s1164
          %1166 = dma.done %s1163, 16
        $region64: #{tpu_custom_call.1} parent=59 // pred_fallthru
          _
      $region60: #{tpu_custom_call.1} parent=5 // pred_fallthru
        _
    $region6: #{tpu_custom_call.1} parent=1 // loop_footer
      %s22 = sadd.s32 1, %s18
    $region7: #{tpu_custom_call.1} parent=1 // loop_footer_branch
      %17 = sbr.rel target = $region3
    $region8: #{tpu_custom_call.1} parent=1 // loop_exit
      _
    %1167 = vsyncpa [#allocation4], 1
    %s1168 = scalar_lea.sflag [#allocation4], 1
    %1169 = vsyncpa %s1168, 1
    %1170 = vsyncpa [#allocation5], 1
    %s1171 = scalar_lea.sflag [#allocation5], 1
    %1172 = vsyncpa %s1171, 1

</llo_original>
